<compile_context>
chip_gen: v7x
topology: tpu7x:2x2x1
jax: 0.10.0
libtpu: 0.0.40
codegen_flags: <defaults>
</compile_context>

<pallas_src>
import jax
import jax.numpy as jnp
from jax.experimental import pallas as pl
from jax.experimental.pallas import tpu as pltpu


def _film_decoder_kernel(qf_ref, a_ref, c_ref, *rest):
    """One (batch-row-group, query-tile) step of the fused FiLM + MLP decoder.

    rest = (W1, b1, ..., W_last, b_last, out_ref)
      Wi : (out_features, in_features) bf16   bi : (out_features, 1) f32
    Activations are (features, queries): queries sit on the 128-wide lane axis.
    """
    out_ref = rest[-1]
    params = rest[:-1]
    n_lin = len(params) // 2          # hidden layers kept in-kernel + final layer
    R = out_ref.shape[0]              # batch rows per grid step (static)

    qf = qf_ref[...]                  # (1, TQ) query tile, lane axis, f32

    # Unrolled over the R batch rows of this step; weight blocks have constant
    # block indices so they stay VMEM-resident across the whole grid.
    for r in range(R):
        a = a_ref[r]                  # (hidden, 1) f32  -- (wg*x+wb) @ W0
        c = c_ref[r]                  # (hidden, 1) f32  -- (bg*x+bb) @ W0 + b0
        # FiLM + first Linear (collapsed in the wrapper) + ReLU: pure VPU bcast.
        h = jnp.maximum(a * qf + c, 0.0)                          # (hidden, TQ) f32

        # Remaining hidden layers: bf16 MXU matmuls, f32 accumulate/bias/ReLU.
        for i in range(n_lin - 1):
            w = params[2 * i][...]                                # (hidden, hidden) bf16
            b = params[2 * i + 1][...]                            # (hidden, 1) f32
            h = jnp.dot(w, h.astype(w.dtype),
                        preferred_element_type=jnp.float32) + b
            h = jnp.maximum(h, 0.0)

        w_last = params[-2][...]                                  # (1, hidden) bf16
        b_last = params[-1][...]                                  # (1, 1) f32
        out = jnp.dot(w_last, h.astype(w_last.dtype),
                      preferred_element_type=jnp.float32) + b_last  # (1, TQ)
        out_ref[r] = out.astype(out_ref.dtype)                    # lane-dense store


def film_decoder_forward(x, params, query_frequencies, *,
                         max_query_tile=2048, rows_per_step=8,
                         matmul_dtype=jnp.bfloat16):
    """x: (B, in_dim) float32, query_frequencies: (Q,). Returns (B, Q) float32."""
    B, in_dim = x.shape
    Q = query_frequencies.shape[0]

    wg, bg, wb, bb, mlp = params
    assert len(mlp) >= 2, "decoder needs at least one hidden layer"

    x = x.astype(jnp.float32)
    qf = query_frequencies.astype(jnp.float32)

    # --- Hoisted FiLM + first-Linear collapse: two batched MXU matmuls ------
    w0, b0 = mlp[0]                               # (in_dim, hidden), (1, hidden)
    A = (x * wg + wb) @ w0                        # (B, hidden)
    C = (x * bg + bb) @ w0 + b0                   # (B, hidden)
    hidden = A.shape[1]

    # --- Query tiling: pad Q to a multiple of 128; cap tiles at 2048 lanes ---
    Q128 = pl.cdiv(Q, 128) * 128
    n_q = pl.cdiv(Q128, max_query_tile)
    TQ = pl.cdiv(Q128 // 128, n_q) * 128
    Q_pad = n_q * TQ

    # --- Batch-row grouping to amortize per-grid-step overhead --------------
    R = max(1, min(rows_per_step, B))
    n_b = pl.cdiv(B, R)
    B_pad = n_b * R

    qf_row = jnp.pad(qf, (0, Q_pad - Q)).reshape(1, Q_pad)                 # (1, Q_pad)
    A3 = jnp.pad(A, ((0, B_pad - B), (0, 0))).reshape(B_pad, hidden, 1)    # (B_pad, hidden, 1)
    C3 = jnp.pad(C, ((0, B_pad - B), (0, 0))).reshape(B_pad, hidden, 1)

    # Remaining layers, kernel layout: W -> (out, in) bf16, bias -> (out, 1) f32.
    mlp_flat = []
    for (w, b) in mlp[1:]:
        mlp_flat += [w.T.astype(matmul_dtype), b.T.astype(jnp.float32)]

    def q_map(b, q):
        return (0, q)

    def row_map(b, q):
        return (b, 0, 0)

    def full_map(b, q):
        return (0, 0)

    in_specs = [
        pl.BlockSpec((1, TQ), q_map),              # query tile (lane axis)
        pl.BlockSpec((R, hidden, 1), row_map),     # A rows for this step
        pl.BlockSpec((R, hidden, 1), row_map),     # C rows for this step
    ]
    for p in mlp_flat:
        in_specs.append(pl.BlockSpec(p.shape, full_map))   # resident weights

    out = pl.pallas_call(
        _film_decoder_kernel,
        out_shape=jax.ShapeDtypeStruct((B_pad, 1, Q_pad), jnp.float32),
        grid_spec=pltpu.PrefetchScalarGridSpec(
            num_scalar_prefetch=0,
            grid=(n_b, n_q),
            in_specs=in_specs,
            out_specs=pl.BlockSpec((R, 1, TQ), lambda b, q: (b, 0, q)),
        ),
        compiler_params=pltpu.CompilerParams(
            dimension_semantics=("parallel", "parallel")),
    )(qf_row, A3, C3, *mlp_flat)

    return out[:B, 0, :Q]


def init_params(key, in_dim, hidden_width, hidden_depth):
    """Deterministic synthetic parameters. Weights stored (in, out), torch-like init."""
    keys = jax.random.split(key, 4 + 2 * (hidden_depth + 1))
    ki = iter(keys)

    def linear(k, fan_in, fan_out):
        k1, k2 = jax.random.split(k)
        bound = 1.0 / jnp.sqrt(fan_in)
        w = jax.random.uniform(k1, (fan_in, fan_out), jnp.float32, -bound, bound)
        b = jax.random.uniform(k2, (1, fan_out), jnp.float32, -bound, bound)
        return w, b

    wg, bg = linear(next(ki), 1, in_dim)   # FiLM gamma: Linear(1, in_dim)
    wb, bb = linear(next(ki), 1, in_dim)   # FiLM beta:  Linear(1, in_dim)

    mlp = []
    last = in_dim
    for _ in range(hidden_depth):
        mlp.append(linear(next(ki), last, hidden_width))
        last = hidden_width
    mlp.append(linear(next(ki), last, 1))   # final Linear(hidden, 1)

    return (wg, bg, wb, bb, mlp)


def reference_forward(x, params, query_frequencies):
    """Pure-JAX f32 reference matching the torch module semantics."""
    B, _ = x.shape
    Q = query_frequencies.shape[0]
    wg, bg, wb, bb, mlp = params
    x_rep = jnp.repeat(x, Q, axis=0)
    qf = jnp.tile(query_frequencies, B).reshape(-1, 1)
    gamma = qf @ wg + bg
    beta = qf @ wb + bb
    h = gamma * x_rep + beta
    for i, (w, b) in enumerate(mlp):
        h = h @ w + b
        if i < len(mlp) - 1:
            h = jnp.maximum(h, 0.0)
    return h.reshape(B, Q)


if __name__ == "__main__":
    # Small shapes consistent with the module's forward
    # (original: in_dim=1024, out_dim=300, hidden = [256]*4 + [1]).
    B, IN_DIM, OUT_DIM = 2, 32, 16
    HIDDEN_WIDTH, HIDDEN_DEPTH = 32, 4

    key = jax.random.PRNGKey(0)
    k_x, k_p = jax.random.split(key)

    x = jax.random.normal(k_x, (B, IN_DIM), jnp.float32)
    params = init_params(k_p, IN_DIM, HIDDEN_WIDTH, HIDDEN_DEPTH)
    query_frequencies = jnp.linspace(-1.0, 1.0, OUT_DIM, dtype=jnp.float32)

    out = film_decoder_forward(x, params, query_frequencies)
    out = jax.block_until_ready(out)

    ref = reference_forward(x, params, query_frequencies)
    assert out.shape == (B, OUT_DIM)
    # bf16 matmul operands (f32 accumulation) -> relaxed tolerance vs f32 reference.
    assert jnp.allclose(out, ref, atol=3e-2, rtol=3e-2), "mismatch vs reference"

    print("KERNEL_OK")
</pallas_src>

<mosaic_0001>
module attributes {stable_mosaic.version = 11 : i64} {
  func.func @_film_decoder_kernel(%arg0: i32, %arg1: i32, %arg2: memref<1x128xf32, #tpu.memory_space<vmem>>, %arg3: memref<2x32x1xf32, #tpu.memory_space<vmem>>, %arg4: memref<2x32x1xf32, #tpu.memory_space<vmem>>, %arg5: memref<32x32xbf16, #tpu.memory_space<vmem>>, %arg6: memref<32x1xf32, #tpu.memory_space<vmem>>, %arg7: memref<32x32xbf16, #tpu.memory_space<vmem>>, %arg8: memref<32x1xf32, #tpu.memory_space<vmem>>, %arg9: memref<32x32xbf16, #tpu.memory_space<vmem>>, %arg10: memref<32x1xf32, #tpu.memory_space<vmem>>, %arg11: memref<1x32xbf16, #tpu.memory_space<vmem>>, %arg12: memref<1x1xf32, #tpu.memory_space<vmem>>, %arg13: memref<2x1x128xf32, #tpu.memory_space<vmem>>) attributes {dimension_semantics = [#tpu.dimension_semantics<parallel>, #tpu.dimension_semantics<parallel>], iteration_bounds = array<i64: 1, 1>, scalar_prefetch = 0 : i64, scratch_operands = 0 : i64, tpu.core_type = #tpu.core_type<tc>, window_params = [{transform_indices = @transform_0, window_bounds = array<i64: 1, 128>}, {transform_indices = @transform_1, window_bounds = array<i64: 2, 32, 1>}, {transform_indices = @transform_2, window_bounds = array<i64: 2, 32, 1>}, {pipeline_mode = #tpu.pipeline_mode<synchronous>, transform_indices = @transform_3, window_bounds = array<i64: 32, 32>}, {pipeline_mode = #tpu.pipeline_mode<synchronous>, transform_indices = @transform_4, window_bounds = array<i64: 32, 1>}, {pipeline_mode = #tpu.pipeline_mode<synchronous>, transform_indices = @transform_5, window_bounds = array<i64: 32, 32>}, {pipeline_mode = #tpu.pipeline_mode<synchronous>, transform_indices = @transform_6, window_bounds = array<i64: 32, 1>}, {pipeline_mode = #tpu.pipeline_mode<synchronous>, transform_indices = @transform_7, window_bounds = array<i64: 32, 32>}, {pipeline_mode = #tpu.pipeline_mode<synchronous>, transform_indices = @transform_8, window_bounds = array<i64: 32, 1>}, {pipeline_mode = #tpu.pipeline_mode<synchronous>, transform_indices = @transform_9, window_bounds = array<i64: 1, 32>}, {pipeline_mode = #tpu.pipeline_mode<synchronous>, transform_indices = @transform_10, window_bounds = array<i64: 1, 1>}, {transform_indices = @transform_11, window_bounds = array<i64: 2, 1, 128>}]} {
    %c0 = arith.constant 0 : index
    %c0_0 = arith.constant 0 : index
    %0 = vector.load %arg2[%c0, %c0_0] : memref<1x128xf32, #tpu.memory_space<vmem>>, vector<1x128xf32>
    %c0_1 = arith.constant 0 : index
    %c0_2 = arith.constant 0 : index
    %c0_3 = arith.constant 0 : index
    %1 = vector.load %arg3[%c0_1, %c0_2, %c0_3] : memref<2x32x1xf32, #tpu.memory_space<vmem>>, vector<1x32x1xf32>
    %2 = vector.shape_cast %1 : vector<1x32x1xf32> to vector<32x1xf32>
    %c0_4 = arith.constant 0 : index
    %c0_5 = arith.constant 0 : index
    %c0_6 = arith.constant 0 : index
    %3 = vector.load %arg4[%c0_4, %c0_5, %c0_6] : memref<2x32x1xf32, #tpu.memory_space<vmem>>, vector<1x32x1xf32>
    %4 = vector.shape_cast %3 : vector<1x32x1xf32> to vector<32x1xf32>
    %5 = vector.broadcast %2 : vector<32x1xf32> to vector<32x128xf32>
    %6 = vector.broadcast %0 : vector<1x128xf32> to vector<32x128xf32>
    %7 = arith.mulf %5, %6 : vector<32x128xf32>
    %8 = vector.broadcast %4 : vector<32x1xf32> to vector<32x128xf32>
    %9 = arith.addf %7, %8 : vector<32x128xf32>
    %cst = arith.constant 0.000000e+00 : f32
    %10 = vector.broadcast %cst : f32 to vector<32x128xf32>
    %11 = arith.maximumf %9, %10 : vector<32x128xf32>
    %c0_7 = arith.constant 0 : index
    %c0_8 = arith.constant 0 : index
    %12 = vector.load %arg5[%c0_7, %c0_8] : memref<32x32xbf16, #tpu.memory_space<vmem>>, vector<32x32xbf16>
    %c0_9 = arith.constant 0 : index
    %c0_10 = arith.constant 0 : index
    %13 = vector.load %arg6[%c0_9, %c0_10] : memref<32x1xf32, #tpu.memory_space<vmem>>, vector<32x1xf32>
    %14 = arith.truncf %11 : vector<32x128xf32> to vector<32x128xbf16>
    %cst_11 = arith.constant dense<0.000000e+00> : vector<32x128xf32>
    %15 = tpu.matmul %12, %14, %cst_11 {dimension_numbers = #tpu.dot_dimension_numbers<[1], [0], [0], [1], [0, 0, 1, 1], [], []>} : vector<32x32xbf16>, vector<32x128xbf16>, vector<32x128xf32> -> vector<32x128xf32>
    %16 = vector.broadcast %13 : vector<32x1xf32> to vector<32x128xf32>
    %17 = arith.addf %15, %16 : vector<32x128xf32>
    %cst_12 = arith.constant 0.000000e+00 : f32
    %18 = vector.broadcast %cst_12 : f32 to vector<32x128xf32>
    %19 = arith.maximumf %17, %18 : vector<32x128xf32>
    %c0_13 = arith.constant 0 : index
    %c0_14 = arith.constant 0 : index
    %20 = vector.load %arg7[%c0_13, %c0_14] : memref<32x32xbf16, #tpu.memory_space<vmem>>, vector<32x32xbf16>
    %c0_15 = arith.constant 0 : index
    %c0_16 = arith.constant 0 : index
    %21 = vector.load %arg8[%c0_15, %c0_16] : memref<32x1xf32, #tpu.memory_space<vmem>>, vector<32x1xf32>
    %22 = arith.truncf %19 : vector<32x128xf32> to vector<32x128xbf16>
    %cst_17 = arith.constant dense<0.000000e+00> : vector<32x128xf32>
    %23 = tpu.matmul %20, %22, %cst_17 {dimension_numbers = #tpu.dot_dimension_numbers<[1], [0], [0], [1], [0, 0, 1, 1], [], []>} : vector<32x32xbf16>, vector<32x128xbf16>, vector<32x128xf32> -> vector<32x128xf32>
    %24 = vector.broadcast %21 : vector<32x1xf32> to vector<32x128xf32>
    %25 = arith.addf %23, %24 : vector<32x128xf32>
    %cst_18 = arith.constant 0.000000e+00 : f32
    %26 = vector.broadcast %cst_18 : f32 to vector<32x128xf32>
    %27 = arith.maximumf %25, %26 : vector<32x128xf32>
    %c0_19 = arith.constant 0 : index
    %c0_20 = arith.constant 0 : index
    %28 = vector.load %arg9[%c0_19, %c0_20] : memref<32x32xbf16, #tpu.memory_space<vmem>>, vector<32x32xbf16>
    %c0_21 = arith.constant 0 : index
    %c0_22 = arith.constant 0 : index
    %29 = vector.load %arg10[%c0_21, %c0_22] : memref<32x1xf32, #tpu.memory_space<vmem>>, vector<32x1xf32>
    %30 = arith.truncf %27 : vector<32x128xf32> to vector<32x128xbf16>
    %cst_23 = arith.constant dense<0.000000e+00> : vector<32x128xf32>
    %31 = tpu.matmul %28, %30, %cst_23 {dimension_numbers = #tpu.dot_dimension_numbers<[1], [0], [0], [1], [0, 0, 1, 1], [], []>} : vector<32x32xbf16>, vector<32x128xbf16>, vector<32x128xf32> -> vector<32x128xf32>
    %32 = vector.broadcast %29 : vector<32x1xf32> to vector<32x128xf32>
    %33 = arith.addf %31, %32 : vector<32x128xf32>
    %cst_24 = arith.constant 0.000000e+00 : f32
    %34 = vector.broadcast %cst_24 : f32 to vector<32x128xf32>
    %35 = arith.maximumf %33, %34 : vector<32x128xf32>
    %c0_25 = arith.constant 0 : index
    %c0_26 = arith.constant 0 : index
    %36 = vector.load %arg11[%c0_25, %c0_26] : memref<1x32xbf16, #tpu.memory_space<vmem>>, vector<1x32xbf16>
    %c0_27 = arith.constant 0 : index
    %c0_28 = arith.constant 0 : index
    %37 = vector.load %arg12[%c0_27, %c0_28] : memref<1x1xf32, #tpu.memory_space<vmem>>, vector<1x1xf32>
    %38 = arith.truncf %35 : vector<32x128xf32> to vector<32x128xbf16>
    %cst_29 = arith.constant dense<0.000000e+00> : vector<1x128xf32>
    %39 = tpu.matmul %36, %38, %cst_29 {dimension_numbers = #tpu.dot_dimension_numbers<[1], [0], [0], [1], [0, 0, 1, 1], [], []>} : vector<1x32xbf16>, vector<32x128xbf16>, vector<1x128xf32> -> vector<1x128xf32>
    %40 = vector.broadcast %37 : vector<1x1xf32> to vector<1x128xf32>
    %41 = arith.addf %39, %40 : vector<1x128xf32>
    %c0_30 = arith.constant 0 : index
    %c0_31 = arith.constant 0 : index
    %c0_32 = arith.constant 0 : index
    %42 = vector.load %arg13[%c0_30, %c0_31, %c0_32] : memref<2x1x128xf32, #tpu.memory_space<vmem>>, vector<1x1x128xf32>
    %43 = vector.shape_cast %42 : vector<1x1x128xf32> to vector<1x128xf32>
    %44 = vector.shape_cast %41 : vector<1x128xf32> to vector<1x1x128xf32>
    tpu.vector_store %arg13[%c0_30, %c0_31, %c0_32], %44 {strides = array<i32>} : memref<2x1x128xf32, #tpu.memory_space<vmem>>, vector<1x1x128xf32>,
    %c1 = arith.constant 1 : index
    %c0_33 = arith.constant 0 : index
    %c0_34 = arith.constant 0 : index
    %45 = vector.load %arg3[%c1, %c0_33, %c0_34] : memref<2x32x1xf32, #tpu.memory_space<vmem>>, vector<1x32x1xf32>
    %46 = vector.shape_cast %45 : vector<1x32x1xf32> to vector<32x1xf32>
    %c1_35 = arith.constant 1 : index
    %c0_36 = arith.constant 0 : index
    %c0_37 = arith.constant 0 : index
    %47 = vector.load %arg4[%c1_35, %c0_36, %c0_37] : memref<2x32x1xf32, #tpu.memory_space<vmem>>, vector<1x32x1xf32>
    %48 = vector.shape_cast %47 : vector<1x32x1xf32> to vector<32x1xf32>
    %49 = vector.broadcast %46 : vector<32x1xf32> to vector<32x128xf32>
    %50 = vector.broadcast %0 : vector<1x128xf32> to vector<32x128xf32>
    %51 = arith.mulf %49, %50 : vector<32x128xf32>
    %52 = vector.broadcast %48 : vector<32x1xf32> to vector<32x128xf32>
    %53 = arith.addf %51, %52 : vector<32x128xf32>
    %cst_38 = arith.constant 0.000000e+00 : f32
    %54 = vector.broadcast %cst_38 : f32 to vector<32x128xf32>
    %55 = arith.maximumf %53, %54 : vector<32x128xf32>
    %c0_39 = arith.constant 0 : index
    %c0_40 = arith.constant 0 : index
    %56 = vector.load %arg5[%c0_39, %c0_40] : memref<32x32xbf16, #tpu.memory_space<vmem>>, vector<32x32xbf16>
    %c0_41 = arith.constant 0 : index
    %c0_42 = arith.constant 0 : index
    %57 = vector.load %arg6[%c0_41, %c0_42] : memref<32x1xf32, #tpu.memory_space<vmem>>, vector<32x1xf32>
    %58 = arith.truncf %55 : vector<32x128xf32> to vector<32x128xbf16>
    %cst_43 = arith.constant dense<0.000000e+00> : vector<32x128xf32>
    %59 = tpu.matmul %56, %58, %cst_43 {dimension_numbers = #tpu.dot_dimension_numbers<[1], [0], [0], [1], [0, 0, 1, 1], [], []>} : vector<32x32xbf16>, vector<32x128xbf16>, vector<32x128xf32> -> vector<32x128xf32>
    %60 = vector.broadcast %57 : vector<32x1xf32> to vector<32x128xf32>
    %61 = arith.addf %59, %60 : vector<32x128xf32>
    %cst_44 = arith.constant 0.000000e+00 : f32
    %62 = vector.broadcast %cst_44 : f32 to vector<32x128xf32>
    %63 = arith.maximumf %61, %62 : vector<32x128xf32>
    %c0_45 = arith.constant 0 : index
    %c0_46 = arith.constant 0 : index
    %64 = vector.load %arg7[%c0_45, %c0_46] : memref<32x32xbf16, #tpu.memory_space<vmem>>, vector<32x32xbf16>
    %c0_47 = arith.constant 0 : index
    %c0_48 = arith.constant 0 : index
    %65 = vector.load %arg8[%c0_47, %c0_48] : memref<32x1xf32, #tpu.memory_space<vmem>>, vector<32x1xf32>
    %66 = arith.truncf %63 : vector<32x128xf32> to vector<32x128xbf16>
    %cst_49 = arith.constant dense<0.000000e+00> : vector<32x128xf32>
    %67 = tpu.matmul %64, %66, %cst_49 {dimension_numbers = #tpu.dot_dimension_numbers<[1], [0], [0], [1], [0, 0, 1, 1], [], []>} : vector<32x32xbf16>, vector<32x128xbf16>, vector<32x128xf32> -> vector<32x128xf32>
    %68 = vector.broadcast %65 : vector<32x1xf32> to vector<32x128xf32>
    %69 = arith.addf %67, %68 : vector<32x128xf32>
    %cst_50 = arith.constant 0.000000e+00 : f32
    %70 = vector.broadcast %cst_50 : f32 to vector<32x128xf32>
    %71 = arith.maximumf %69, %70 : vector<32x128xf32>
    %c0_51 = arith.constant 0 : index
    %c0_52 = arith.constant 0 : index
    %72 = vector.load %arg9[%c0_51, %c0_52] : memref<32x32xbf16, #tpu.memory_space<vmem>>, vector<32x32xbf16>
    %c0_53 = arith.constant 0 : index
    %c0_54 = arith.constant 0 : index
    %73 = vector.load %arg10[%c0_53, %c0_54] : memref<32x1xf32, #tpu.memory_space<vmem>>, vector<32x1xf32>
    %74 = arith.truncf %71 : vector<32x128xf32> to vector<32x128xbf16>
    %cst_55 = arith.constant dense<0.000000e+00> : vector<32x128xf32>
    %75 = tpu.matmul %72, %74, %cst_55 {dimension_numbers = #tpu.dot_dimension_numbers<[1], [0], [0], [1], [0, 0, 1, 1], [], []>} : vector<32x32xbf16>, vector<32x128xbf16>, vector<32x128xf32> -> vector<32x128xf32>
    %76 = vector.broadcast %73 : vector<32x1xf32> to vector<32x128xf32>
    %77 = arith.addf %75, %76 : vector<32x128xf32>
    %cst_56 = arith.constant 0.000000e+00 : f32
    %78 = vector.broadcast %cst_56 : f32 to vector<32x128xf32>
    %79 = arith.maximumf %77, %78 : vector<32x128xf32>
    %c0_57 = arith.constant 0 : index
    %c0_58 = arith.constant 0 : index
    %80 = vector.load %arg11[%c0_57, %c0_58] : memref<1x32xbf16, #tpu.memory_space<vmem>>, vector<1x32xbf16>
    %c0_59 = arith.constant 0 : index
    %c0_60 = arith.constant 0 : index
    %81 = vector.load %arg12[%c0_59, %c0_60] : memref<1x1xf32, #tpu.memory_space<vmem>>, vector<1x1xf32>
    %82 = arith.truncf %79 : vector<32x128xf32> to vector<32x128xbf16>
    %cst_61 = arith.constant dense<0.000000e+00> : vector<1x128xf32>
    %83 = tpu.matmul %80, %82, %cst_61 {dimension_numbers = #tpu.dot_dimension_numbers<[1], [0], [0], [1], [0, 0, 1, 1], [], []>} : vector<1x32xbf16>, vector<32x128xbf16>, vector<1x128xf32> -> vector<1x128xf32>
    %84 = vector.broadcast %81 : vector<1x1xf32> to vector<1x128xf32>
    %85 = arith.addf %83, %84 : vector<1x128xf32>
    %c1_62 = arith.constant 1 : index
    %c0_63 = arith.constant 0 : index
    %c0_64 = arith.constant 0 : index
    %86 = vector.load %arg13[%c1_62, %c0_63, %c0_64] : memref<2x1x128xf32, #tpu.memory_space<vmem>>, vector<1x1x128xf32>
    %87 = vector.shape_cast %86 : vector<1x1x128xf32> to vector<1x128xf32>
    %88 = vector.shape_cast %85 : vector<1x128xf32> to vector<1x1x128xf32>
    tpu.vector_store %arg13[%c1_62, %c0_63, %c0_64], %88 {strides = array<i32>} : memref<2x1x128xf32, #tpu.memory_space<vmem>>, vector<1x1x128xf32>,
    return
  }
  func.func @transform_0(%arg0: i32, %arg1: i32) -> (i32, i32) {
    %c0_i32 = arith.constant 0 : i32
    %c0_i32_0 = arith.constant 0 : i32
    return %c0_i32, %arg1 : i32, i32
  }
  func.func @transform_1(%arg0: i32, %arg1: i32) -> (i32, i32, i32) {
    %c0_i32 = arith.constant 0 : i32
    %c0_i32_0 = arith.constant 0 : i32
    %c0_i32_1 = arith.constant 0 : i32
    return %arg0, %c0_i32, %c0_i32_0 : i32, i32, i32
  }
  func.func @transform_2(%arg0: i32, %arg1: i32) -> (i32, i32, i32) {
    %c0_i32 = arith.constant 0 : i32
    %c0_i32_0 = arith.constant 0 : i32
    %c0_i32_1 = arith.constant 0 : i32
    return %arg0, %c0_i32, %c0_i32_0 : i32, i32, i32
  }
  func.func @transform_3(%arg0: i32, %arg1: i32) -> (i32, i32) {
    %c0_i32 = arith.constant 0 : i32
    %c0_i32_0 = arith.constant 0 : i32
    %c0_i32_1 = arith.constant 0 : i32
    return %c0_i32, %c0_i32_0 : i32, i32
  }
  func.func @transform_4(%arg0: i32, %arg1: i32) -> (i32, i32) {
    %c0_i32 = arith.constant 0 : i32
    %c0_i32_0 = arith.constant 0 : i32
    %c0_i32_1 = arith.constant 0 : i32
    return %c0_i32, %c0_i32_0 : i32, i32
  }
  func.func @transform_5(%arg0: i32, %arg1: i32) -> (i32, i32) {
    %c0_i32 = arith.constant 0 : i32
    %c0_i32_0 = arith.constant 0 : i32
    %c0_i32_1 = arith.constant 0 : i32
    return %c0_i32, %c0_i32_0 : i32, i32
  }
  func.func @transform_6(%arg0: i32, %arg1: i32) -> (i32, i32) {
    %c0_i32 = arith.constant 0 : i32
    %c0_i32_0 = arith.constant 0 : i32
    %c0_i32_1 = arith.constant 0 : i32
    return %c0_i32, %c0_i32_0 : i32, i32
  }
  func.func @transform_7(%arg0: i32, %arg1: i32) -> (i32, i32) {
    %c0_i32 = arith.constant 0 : i32
    %c0_i32_0 = arith.constant 0 : i32
    %c0_i32_1 = arith.constant 0 : i32
    return %c0_i32, %c0_i32_0 : i32, i32
  }
  func.func @transform_8(%arg0: i32, %arg1: i32) -> (i32, i32) {
    %c0_i32 = arith.constant 0 : i32
    %c0_i32_0 = arith.constant 0 : i32
    %c0_i32_1 = arith.constant 0 : i32
    return %c0_i32, %c0_i32_0 : i32, i32
  }
  func.func @transform_9(%arg0: i32, %arg1: i32) -> (i32, i32) {
    %c0_i32 = arith.constant 0 : i32
    %c0_i32_0 = arith.constant 0 : i32
    %c0_i32_1 = arith.constant 0 : i32
    return %c0_i32, %c0_i32_0 : i32, i32
  }
  func.func @transform_10(%arg0: i32, %arg1: i32) -> (i32, i32) {
    %c0_i32 = arith.constant 0 : i32
    %c0_i32_0 = arith.constant 0 : i32
    %c0_i32_1 = arith.constant 0 : i32
    return %c0_i32, %c0_i32_0 : i32, i32
  }
  func.func @transform_11(%arg0: i32, %arg1: i32) -> (i32, i32, i32) {
    %c0_i32 = arith.constant 0 : i32
    %c0_i32_0 = arith.constant 0 : i32
    return %arg0, %c0_i32, %arg1 : i32, i32, i32
  }
}

</mosaic_0001>

<llo_original>
// kernel: tpu_custom_call.1
$region0: #{tpu_custom_call.1}
  #allocation0 [shape = 'u32[]', space=smem, size = 0x4, offset = 0x4, fixed_abs, tag = 'smem constant byte address 0x4 - core index']
  #allocation1 [shape = 'u32[144,128]{1,0:T(1,128)}', space=vmem, size = 0x12000, scoped, tag = 'internal scratch']
  #allocation2 [shape = 'f32[1,1]{1,0:T(1,128)S(1)}', space=vmem, size = 0x200, scoped, tag = 'scoped memory for tpu_custom_call.1']
  %s0 = inlined_call_operand.vmem [shape: f32[1,128], index: 0, kind: input, shape index: {}]
  %s1 = inlined_call_operand.vmem [shape: f32[2,32,1], index: 1, kind: input, shape index: {}]
  %s2 = inlined_call_operand.vmem [shape: f32[2,32,1], index: 2, kind: input, shape index: {}]
  %s3 = inlined_call_operand.vmem [shape: bf16[32,32], index: 3, kind: input, shape index: {}]
  %s4 = inlined_call_operand.vmem [shape: f32[32,1], index: 4, kind: input, shape index: {}]
  %s5 = inlined_call_operand.vmem [shape: bf16[32,32], index: 5, kind: input, shape index: {}]
  %s6 = inlined_call_operand.vmem [shape: f32[32,1], index: 6, kind: input, shape index: {}]
  %s7 = inlined_call_operand.vmem [shape: bf16[32,32], index: 7, kind: input, shape index: {}]
  %s8 = inlined_call_operand.vmem [shape: f32[32,1], index: 8, kind: input, shape index: {}]
  %s9 = inlined_call_operand.vmem [shape: bf16[1,32], index: 9, kind: input, shape index: {}]
  %s10 = inlined_call_operand.<no memory space> [shape: f32[1,1], index: 10, kind: input, shape index: {}]
  %s11 = inlined_call_operand.hbm [shape: f32[2,1,128], index: 11, kind: output, shape index: {}]
  %s12 = sld [smem:[#allocation0]]
  $region54: #{tpu_custom_call.1} parent=0
    _
  %s14 = ssub.s32 1, %s12
  %s15 = scalar_select 0, %s14, %s12
  %v16 = vstv %s10
  %17 = vst [vmem:[#allocation2] sm:$0x1] %v16
  $region1: #{tpu_custom_call.1} parent=0
    #allocation3 [shape = 'u8[1024]{0}', space=vmem, size = 0x400, scoped, tag = 'output window, operand 0, single buffered']
    #allocation4 [shape = 's32[1]{0}', space=sflag, size = 0x4, scoped, tag = 'scoped memory for tpu_custom_call.1']
    %18 = vsyncpa [#allocation4], 0
    // Predicated region
    $region2: #{tpu_custom_call.1} parent=1 // pred_check
      _
    $region3: #{tpu_custom_call.1} parent=1 // pred_check_branch
      %20 = sbr.rel (0) target = $region5
    $region4: #{tpu_custom_call.1} parent=1 // pred_region
      _
    $region5: #{tpu_custom_call.1} parent=1 // pred_fallthru
      _
    // Predicated region
    $region6: #{tpu_custom_call.1} parent=1 // pred_check
      _
    $region7: #{tpu_custom_call.1} parent=1 // pred_check_branch
      %22 = sbr.rel (0) target = $region9
    $region8: #{tpu_custom_call.1} parent=1 // pred_region
      _
    $region9: #{tpu_custom_call.1} parent=1 // pred_fallthru
      _
    // Predicated region
    $region10: #{tpu_custom_call.1} parent=1 // pred_check
      _
    $region11: #{tpu_custom_call.1} parent=1 // pred_check_branch
      %24 = sbr.rel (0) target = $region13
    $region12: #{tpu_custom_call.1} parent=1 // pred_region
      _
    $region13: #{tpu_custom_call.1} parent=1 // pred_fallthru
      _
    // Predicated region
    $region14: #{tpu_custom_call.1} parent=1 // pred_check
      _
    $region15: #{tpu_custom_call.1} parent=1 // pred_check_branch
      %26 = sbr.rel (0) target = $region17
    $region16: #{tpu_custom_call.1} parent=1 // pred_region
      _
    $region17: #{tpu_custom_call.1} parent=1 // pred_fallthru
      _
    // Predicated region
    $region18: #{tpu_custom_call.1} parent=1 // pred_check
      _
    $region19: #{tpu_custom_call.1} parent=1 // pred_check_branch
      %28 = sbr.rel (0) target = $region21
    $region20: #{tpu_custom_call.1} parent=1 // pred_region
      _
    $region21: #{tpu_custom_call.1} parent=1 // pred_fallthru
      _
    // Predicated region
    $region22: #{tpu_custom_call.1} parent=1 // pred_check
      _
    $region23: #{tpu_custom_call.1} parent=1 // pred_check_branch
      %30 = sbr.rel (0) target = $region25
    $region24: #{tpu_custom_call.1} parent=1 // pred_region
      _
    $region25: #{tpu_custom_call.1} parent=1 // pred_fallthru
      _
    // Predicated region
    $region26: #{tpu_custom_call.1} parent=1 // pred_check
      _
    $region27: #{tpu_custom_call.1} parent=1 // pred_check_branch
      %32 = sbr.rel (0) target = $region29
    $region28: #{tpu_custom_call.1} parent=1 // pred_region
      _
    $region29: #{tpu_custom_call.1} parent=1 // pred_fallthru
      _
    // Predicated region
    $region30: #{tpu_custom_call.1} parent=1 // pred_check
      _
    $region31: #{tpu_custom_call.1} parent=1 // pred_check_branch
      %34 = sbr.rel (0) target = $region33
    $region32: #{tpu_custom_call.1} parent=1 // pred_region
      _
    $region33: #{tpu_custom_call.1} parent=1 // pred_fallthru
      _
    // Predicated region
    $region34: #{tpu_custom_call.1} parent=1 // pred_check
      _
    $region35: #{tpu_custom_call.1} parent=1 // pred_check_branch
      %36 = sbr.rel (0) target = $region37
    $region36: #{tpu_custom_call.1} parent=1 // pred_region
      _
    $region37: #{tpu_custom_call.1} parent=1 // pred_fallthru
      _
    // Predicated region
    $region38: #{tpu_custom_call.1} parent=1 // pred_check
      _
    $region39: #{tpu_custom_call.1} parent=1 // pred_check_branch
      %38 = sbr.rel (0) target = $region41
    $region40: #{tpu_custom_call.1} parent=1 // pred_region
      _
    $region41: #{tpu_custom_call.1} parent=1 // pred_fallthru
      _
    // Predicated region
    $region42: #{tpu_custom_call.1} parent=1 // pred_check
      _
    $region43: #{tpu_custom_call.1} parent=1 // pred_check_branch
      %40 = sbr.rel (0) target = $region45
    $region44: #{tpu_custom_call.1} parent=1 // pred_region
      _
    $region45: #{tpu_custom_call.1} parent=1 // pred_fallthru
      _
    %v42 = vld [vmem:[%s0] sm:$0x1]
    %v43 = vld [vmem:[%s1] sm:$0xff]
    %v44 = vld [vmem:[%s1 + $0x8] sm:$0xff]
    %v45 = vld [vmem:[%s1 + $0x10] sm:$0xff]
    %v46 = vld [vmem:[%s1 + $0x18] sm:$0xff]
    %v47 = vld [vmem:[%s2] sm:$0xff]
    %v48 = vld [vmem:[%s2 + $0x8] sm:$0xff]
    %v49 = vld [vmem:[%s2 + $0x10] sm:$0xff]
    %v50 = vld [vmem:[%s2 + $0x18] sm:$0xff]
    %52 = vset.pattern.permute.xlu0 0
    %53 = vperm.xlu0 %52, %v43
    %v54 = vpop.permute.xlu0 %53
    %57 = vset.pattern.permute.xlu0 0
    %58 = vperm.xlu0 %57, %v44
    %v59 = vpop.permute.xlu0 %58
    %62 = vset.pattern.permute.xlu0 0
    %63 = vperm.xlu0 %62, %v45
    %v64 = vpop.permute.xlu0 %63
    %67 = vset.pattern.permute.xlu0 0
    %68 = vperm.xlu0 %67, %v46
    %v69 = vpop.permute.xlu0 %68
    %v72 = vlaneseq
    %v73 = vshrl.u32 %v72, 7
    %v74 = vsub.s32 0, %v73
    %v75 = vrot.slane %v42, %v74
    %v77 = vmul.f32 %v54, %v75
    %v78 = vmul.f32 %v59, %v75
    %v79 = vmul.f32 %v64, %v75
    %v80 = vmul.f32 %v69, %v75
    %82 = vset.pattern.permute.xlu0 0
    %83 = vperm.xlu0 %82, %v47
    %v84 = vpop.permute.xlu0 %83
    %87 = vset.pattern.permute.xlu0 0
    %88 = vperm.xlu0 %87, %v48
    %v89 = vpop.permute.xlu0 %88
    %92 = vset.pattern.permute.xlu0 0
    %93 = vperm.xlu0 %92, %v49
    %v94 = vpop.permute.xlu0 %93
    %97 = vset.pattern.permute.xlu0 0
    %98 = vperm.xlu0 %97, %v50
    %v99 = vpop.permute.xlu0 %98
    %v101 = vadd.f32 %v77, %v84
    %v102 = vadd.f32 %v78, %v89
    %v103 = vadd.f32 %v79, %v94
    %v104 = vadd.f32 %v80, %v99
    %v105 = vmax.f32 %v101, 0.0
    %v106 = vmax.f32 %v102, 0.0
    %v107 = vmax.f32 %v103, 0.0
    %v108 = vmax.f32 %v104, 0.0
    %v109 = vld [vmem:[%s3] sm:$0xf]
    %v110 = vld [vmem:[%s3 + $0x4] sm:$0xf]
    %v111 = vld [vmem:[%s3 + $0x8] sm:$0xf]
    %v112 = vld [vmem:[%s3 + $0xc] sm:$0xf]
    %v113 = vld [vmem:[%s4] sm:$0xff]
    %v114 = vld [vmem:[%s4 + $0x8] sm:$0xff]
    %v115 = vld [vmem:[%s4 + $0x10] sm:$0xff]
    %v116 = vld [vmem:[%s4 + $0x18] sm:$0xff]
    %v117 = vpack.c.bf16 %v106, %v105
    %v118 = vpack.c.bf16 %v108, %v107
    %120 = vset.pattern.permute.xlu0 0
    %121 = vperm.xlu0 %120, %v113
    %v122 = vpop.permute.xlu0 %121
    %125 = vset.pattern.permute.xlu0 0
    %126 = vperm.xlu0 %125, %v114
    %v127 = vpop.permute.xlu0 %126
    %130 = vset.pattern.permute.xlu0 0
    %131 = vperm.xlu0 %130, %v115
    %v132 = vpop.permute.xlu0 %131
    %135 = vset.pattern.permute.xlu0 0
    %136 = vperm.xlu0 %135, %v116
    %v137 = vpop.permute.xlu0 %136
    %v143 = vunpack.c.l.b16 %v109
    %v144 = vunpack.c.l.b16 %v110
    %v145 = vunpack.c.l.b16 %v111
    %v146 = vunpack.c.l.b16 %v112
    %v147 = vpack.c.b16 %v144, %v143
    %v148 = vpack.c.b16 %v146, %v145
    %vm149 = vcmask 261120
    %v151 = vsel %vm149, %v147, 0
    %v154 = vsel %vm149, %v148, 0
    %156 = vmatprep.subr.bf16.mxu0 0
    %157 = vmatpush1.bf16.msra.mxu0 %v117
    %158 = vmatprep.subr.bf16.mxu0 0
    %159 = vmatpush1.bf16.msra.mxu0 %v118
    %160 = vmatprep.subr.bf16.mxu0 0
    %161 = vmatpush1.bf16.msra.mxu0 0
    %162 = vmatprep.subr.bf16.mxu0 0
    %163 = vmatpush1.bf16.msra.mxu0 0
    %164 = vmatprep.subr.bf16.mxu0 0
    %165 = vmatpush1.bf16.msra.mxu0 0
    %166 = vmatprep.subr.bf16.mxu0 0
    %167 = vmatpush1.bf16.msra.mxu0 0
    %168 = vmatprep.subr.bf16.mxu0 0
    %169 = vmatpush1.bf16.msra.mxu0 0
    %170 = vmatprep.subr.bf16.mxu0 0
    %171 = vmatpush1.bf16.msra.mxu0 0
    %172 = vmatprep.subr.bf16.mxu0 0
    %173 = vmatpush1.bf16.msra.mxu0 0
    %174 = vmatprep.subr.bf16.mxu0 0
    %175 = vmatpush1.bf16.msra.mxu0 0
    %176 = vmatprep.subr.bf16.mxu0 0
    %177 = vmatpush1.bf16.msra.mxu0 0
    %178 = vmatprep.subr.bf16.mxu0 0
    %179 = vmatpush1.bf16.msra.mxu0 0
    %180 = vmatprep.subr.bf16.mxu0 0
    %181 = vmatpush1.bf16.msra.mxu0 0
    %182 = vmatprep.subr.bf16.mxu0 0
    %183 = vmatpush1.bf16.msra.mxu0 0
    %184 = vmatprep.subr.bf16.mxu0 0
    %185 = vmatpush1.bf16.msra.mxu0 0
    %186 = vmatprep.subr.bf16.mxu0 0
    %187 = vmatpush1.bf16.msra.mxu0 0
    %188 = vmatprep.mubr.bf16.mxu0 0
    %189 = vmatmul.mubr.bf16.gmra.mrb[0].mxu0 %v151
    %v190 = vpop.f32.mrb[0].mxu0
    %v191 = vadd.f32 %v122, %v190
    %v192 = vpop.f32.mrb[0].mxu0
    %v193 = vpop.f32.mrb[0].mxu0
    %v194 = vadd.f32 %v127, %v193
    %v195 = vpop.f32.mrb[0].mxu0
    %196 = vmatprep.mubr.bf16.mxu0 0
    %197 = vmatmul.mubr.bf16.gmra.mrb[0].mxu0 %v154
    %v198 = vpop.f32.mrb[0].mxu0
    %v199 = vadd.f32 %v132, %v198
    %v200 = vpop.f32.mrb[0].mxu0
    %v201 = vpop.f32.mrb[0].mxu0
    %v202 = vadd.f32 %v137, %v201
    %v203 = vpop.f32.mrb[0].mxu0
    %204 = vdwg.mxu0
    %v205 = vmax.f32 %v191, 0.0
    %v206 = vmax.f32 %v194, 0.0
    %v207 = vmax.f32 %v199, 0.0
    %v208 = vmax.f32 %v202, 0.0
    %v209 = vld [vmem:[%s5] sm:$0xf]
    %v210 = vld [vmem:[%s5 + $0x4] sm:$0xf]
    %v211 = vld [vmem:[%s5 + $0x8] sm:$0xf]
    %v212 = vld [vmem:[%s5 + $0xc] sm:$0xf]
    %v213 = vld [vmem:[%s6] sm:$0xff]
    %v214 = vld [vmem:[%s6 + $0x8] sm:$0xff]
    %v215 = vld [vmem:[%s6 + $0x10] sm:$0xff]
    %v216 = vld [vmem:[%s6 + $0x18] sm:$0xff]
    %v217 = vpack.c.bf16 %v206, %v205
    %v218 = vpack.c.bf16 %v208, %v207
    %220 = vset.pattern.permute.xlu0 0
    %221 = vperm.xlu0 %220, %v213
    %v222 = vpop.permute.xlu0 %221
    %225 = vset.pattern.permute.xlu0 0
    %226 = vperm.xlu0 %225, %v214
    %v227 = vpop.permute.xlu0 %226
    %230 = vset.pattern.permute.xlu0 0
    %231 = vperm.xlu0 %230, %v215
    %v232 = vpop.permute.xlu0 %231
    %235 = vset.pattern.permute.xlu0 0
    %236 = vperm.xlu0 %235, %v216
    %v237 = vpop.permute.xlu0 %236
    %v243 = vunpack.c.l.b16 %v209
    %v244 = vunpack.c.l.b16 %v210
    %v245 = vunpack.c.l.b16 %v211
    %v246 = vunpack.c.l.b16 %v212
    %v247 = vpack.c.b16 %v244, %v243
    %v248 = vpack.c.b16 %v246, %v245
    %v250 = vsel %vm149, %v247, 0
    %v253 = vsel %vm149, %v248, 0
    %255 = vmatprep.subr.bf16.mxu0 0
    %256 = vmatpush1.bf16.msra.mxu0 %v217
    %257 = vmatprep.subr.bf16.mxu0 0
    %258 = vmatpush1.bf16.msra.mxu0 %v218
    %259 = vmatprep.subr.bf16.mxu0 0
    %260 = vmatpush1.bf16.msra.mxu0 0
    %261 = vmatprep.subr.bf16.mxu0 0
    %262 = vmatpush1.bf16.msra.mxu0 0
    %263 = vmatprep.subr.bf16.mxu0 0
    %264 = vmatpush1.bf16.msra.mxu0 0
    %265 = vmatprep.subr.bf16.mxu0 0
    %266 = vmatpush1.bf16.msra.mxu0 0
    %267 = vmatprep.subr.bf16.mxu0 0
    %268 = vmatpush1.bf16.msra.mxu0 0
    %269 = vmatprep.subr.bf16.mxu0 0
    %270 = vmatpush1.bf16.msra.mxu0 0
    %271 = vmatprep.subr.bf16.mxu0 0
    %272 = vmatpush1.bf16.msra.mxu0 0
    %273 = vmatprep.subr.bf16.mxu0 0
    %274 = vmatpush1.bf16.msra.mxu0 0
    %275 = vmatprep.subr.bf16.mxu0 0
    %276 = vmatpush1.bf16.msra.mxu0 0
    %277 = vmatprep.subr.bf16.mxu0 0
    %278 = vmatpush1.bf16.msra.mxu0 0
    %279 = vmatprep.subr.bf16.mxu0 0
    %280 = vmatpush1.bf16.msra.mxu0 0
    %281 = vmatprep.subr.bf16.mxu0 0
    %282 = vmatpush1.bf16.msra.mxu0 0
    %283 = vmatprep.subr.bf16.mxu0 0
    %284 = vmatpush1.bf16.msra.mxu0 0
    %285 = vmatprep.subr.bf16.mxu0 0
    %286 = vmatpush1.bf16.msra.mxu0 0
    %287 = vmatprep.mubr.bf16.mxu0 0
    %288 = vmatmul.mubr.bf16.gmra.mrb[0].mxu0 %v250
    %v289 = vpop.f32.mrb[0].mxu0
    %v290 = vadd.f32 %v222, %v289
    %v291 = vpop.f32.mrb[0].mxu0
    %v292 = vpop.f32.mrb[0].mxu0
    %v293 = vadd.f32 %v227, %v292
    %v294 = vpop.f32.mrb[0].mxu0
    %295 = vmatprep.mubr.bf16.mxu0 0
    %296 = vmatmul.mubr.bf16.gmra.mrb[0].mxu0 %v253
    %v297 = vpop.f32.mrb[0].mxu0
    %v298 = vadd.f32 %v232, %v297
    %v299 = vpop.f32.mrb[0].mxu0
    %v300 = vpop.f32.mrb[0].mxu0
    %v301 = vadd.f32 %v237, %v300
    %v302 = vpop.f32.mrb[0].mxu0
    %303 = vdwg.mxu0
    %v304 = vmax.f32 %v290, 0.0
    %v305 = vmax.f32 %v293, 0.0
    %v306 = vmax.f32 %v298, 0.0
    %v307 = vmax.f32 %v301, 0.0
    %v308 = vld [vmem:[%s7] sm:$0xf]
    %v309 = vld [vmem:[%s7 + $0x4] sm:$0xf]
    %v310 = vld [vmem:[%s7 + $0x8] sm:$0xf]
    %v311 = vld [vmem:[%s7 + $0xc] sm:$0xf]
    %v312 = vld [vmem:[%s8] sm:$0xff]
    %v313 = vld [vmem:[%s8 + $0x8] sm:$0xff]
    %v314 = vld [vmem:[%s8 + $0x10] sm:$0xff]
    %v315 = vld [vmem:[%s8 + $0x18] sm:$0xff]
    %v316 = vpack.c.bf16 %v305, %v304
    %v317 = vpack.c.bf16 %v307, %v306
    %319 = vset.pattern.permute.xlu0 0
    %320 = vperm.xlu0 %319, %v312
    %v321 = vpop.permute.xlu0 %320
    %324 = vset.pattern.permute.xlu0 0
    %325 = vperm.xlu0 %324, %v313
    %v326 = vpop.permute.xlu0 %325
    %329 = vset.pattern.permute.xlu0 0
    %330 = vperm.xlu0 %329, %v314
    %v331 = vpop.permute.xlu0 %330
    %334 = vset.pattern.permute.xlu0 0
    %335 = vperm.xlu0 %334, %v315
    %v336 = vpop.permute.xlu0 %335
    %v342 = vunpack.c.l.b16 %v308
    %v343 = vunpack.c.l.b16 %v309
    %v344 = vunpack.c.l.b16 %v310
    %v345 = vunpack.c.l.b16 %v311
    %v346 = vpack.c.b16 %v343, %v342
    %v347 = vpack.c.b16 %v345, %v344
    %v349 = vsel %vm149, %v346, 0
    %v352 = vsel %vm149, %v347, 0
    %354 = vmatprep.subr.bf16.mxu0 0
    %355 = vmatpush1.bf16.msra.mxu0 %v316
    %356 = vmatprep.subr.bf16.mxu0 0
    %357 = vmatpush1.bf16.msra.mxu0 %v317
    %358 = vmatprep.subr.bf16.mxu0 0
    %359 = vmatpush1.bf16.msra.mxu0 0
    %360 = vmatprep.subr.bf16.mxu0 0
    %361 = vmatpush1.bf16.msra.mxu0 0
    %362 = vmatprep.subr.bf16.mxu0 0
    %363 = vmatpush1.bf16.msra.mxu0 0
    %364 = vmatprep.subr.bf16.mxu0 0
    %365 = vmatpush1.bf16.msra.mxu0 0
    %366 = vmatprep.subr.bf16.mxu0 0
    %367 = vmatpush1.bf16.msra.mxu0 0
    %368 = vmatprep.subr.bf16.mxu0 0
    %369 = vmatpush1.bf16.msra.mxu0 0
    %370 = vmatprep.subr.bf16.mxu0 0
    %371 = vmatpush1.bf16.msra.mxu0 0
    %372 = vmatprep.subr.bf16.mxu0 0
    %373 = vmatpush1.bf16.msra.mxu0 0
    %374 = vmatprep.subr.bf16.mxu0 0
    %375 = vmatpush1.bf16.msra.mxu0 0
    %376 = vmatprep.subr.bf16.mxu0 0
    %377 = vmatpush1.bf16.msra.mxu0 0
    %378 = vmatprep.subr.bf16.mxu0 0
    %379 = vmatpush1.bf16.msra.mxu0 0
    %380 = vmatprep.subr.bf16.mxu0 0
    %381 = vmatpush1.bf16.msra.mxu0 0
    %382 = vmatprep.subr.bf16.mxu0 0
    %383 = vmatpush1.bf16.msra.mxu0 0
    %384 = vmatprep.subr.bf16.mxu0 0
    %385 = vmatpush1.bf16.msra.mxu0 0
    %386 = vmatprep.mubr.bf16.mxu0 0
    %387 = vmatmul.mubr.bf16.gmra.mrb[0].mxu0 %v349
    %v388 = vpop.f32.mrb[0].mxu0
    %v389 = vadd.f32 %v321, %v388
    %v390 = vpop.f32.mrb[0].mxu0
    %v391 = vpop.f32.mrb[0].mxu0
    %v392 = vadd.f32 %v326, %v391
    %v393 = vpop.f32.mrb[0].mxu0
    %394 = vmatprep.mubr.bf16.mxu0 0
    %395 = vmatmul.mubr.bf16.gmra.mrb[0].mxu0 %v352
    %v396 = vpop.f32.mrb[0].mxu0
    %v397 = vadd.f32 %v331, %v396
    %v398 = vpop.f32.mrb[0].mxu0
    %v399 = vpop.f32.mrb[0].mxu0
    %v400 = vadd.f32 %v336, %v399
    %v401 = vpop.f32.mrb[0].mxu0
    %402 = vdwg.mxu0
    %v403 = vmax.f32 %v389, 0.0
    %v404 = vmax.f32 %v392, 0.0
    %v405 = vmax.f32 %v397, 0.0
    %v406 = vmax.f32 %v400, 0.0
    %v407 = vld [vmem:[%s9] sm:$0x1]
    %v408 = vld [vmem:[#allocation2] sm:$0x1]
    %v409 = vpack.c.bf16 %v404, %v403
    %v410 = vpack.c.bf16 %v406, %v405
    %412 = vset.pattern.permute.xlu0 0
    %413 = vperm.xlu0 %412, %v408
    %v414 = vpop.permute.xlu0 %413
    %v416 = vlaneseq
    %v417 = vshrl.u32 %v416, 7
    %v418 = vsub.s32 0, %v417
    %v419 = vrot.slane %v414, %v418
    %v421 = vsel %vm149, %v407, 0
    %423 = vmatprep.subr.bf16.mxu0 0
    %424 = vmatpush1.bf16.msra.mxu0 %v409
    %425 = vmatprep.subr.bf16.mxu0 0
    %426 = vmatpush1.bf16.msra.mxu0 %v410
    %427 = vmatprep.subr.bf16.mxu0 0
    %428 = vmatpush1.bf16.msra.mxu0 0
    %429 = vmatprep.subr.bf16.mxu0 0
    %430 = vmatpush1.bf16.msra.mxu0 0
    %431 = vmatprep.subr.bf16.mxu0 0
    %432 = vmatpush1.bf16.msra.mxu0 0
    %433 = vmatprep.subr.bf16.mxu0 0
    %434 = vmatpush1.bf16.msra.mxu0 0
    %435 = vmatprep.subr.bf16.mxu0 0
    %436 = vmatpush1.bf16.msra.mxu0 0
    %437 = vmatprep.subr.bf16.mxu0 0
    %438 = vmatpush1.bf16.msra.mxu0 0
    %439 = vmatprep.subr.bf16.mxu0 0
    %440 = vmatpush1.bf16.msra.mxu0 0
    %441 = vmatprep.subr.bf16.mxu0 0
    %442 = vmatpush1.bf16.msra.mxu0 0
    %443 = vmatprep.subr.bf16.mxu0 0
    %444 = vmatpush1.bf16.msra.mxu0 0
    %445 = vmatprep.subr.bf16.mxu0 0
    %446 = vmatpush1.bf16.msra.mxu0 0
    %447 = vmatprep.subr.bf16.mxu0 0
    %448 = vmatpush1.bf16.msra.mxu0 0
    %449 = vmatprep.subr.bf16.mxu0 0
    %450 = vmatpush1.bf16.msra.mxu0 0
    %451 = vmatprep.subr.bf16.mxu0 0
    %452 = vmatpush1.bf16.msra.mxu0 0
    %453 = vmatprep.subr.bf16.mxu0 0
    %454 = vmatpush1.bf16.msra.mxu0 0
    %455 = vmatprep.mubr.bf16.mxu0 0
    %456 = vmatmul.mubr.bf16.gmra.mrb[0].mxu0 %v421
    %v457 = vpop.f32.mrb[0].mxu0
    %v458 = vadd.f32 %v419, %v457
    %v459 = vpop.f32.mrb[0].mxu0
    %v460 = vpop.f32.mrb[0].mxu0
    %v461 = vpop.f32.mrb[0].mxu0
    %462 = vdwg.mxu0
    %463 = vst [vmem:[#allocation3] sm:$0x1] %v458
    %s464 = scalar_lea.vmem %s1, 32
    %v465 = vld [vmem:[%s464] sm:$0xff]
    %v466 = vld [vmem:[%s464 + $0x8] sm:$0xff]
    %v467 = vld [vmem:[%s464 + $0x10] sm:$0xff]
    %v468 = vld [vmem:[%s464 + $0x18] sm:$0xff]
    %s469 = scalar_lea.vmem %s2, 32
    %v470 = vld [vmem:[%s469] sm:$0xff]
    %v471 = vld [vmem:[%s469 + $0x8] sm:$0xff]
    %v472 = vld [vmem:[%s469 + $0x10] sm:$0xff]
    %v473 = vld [vmem:[%s469 + $0x18] sm:$0xff]
    %475 = vset.pattern.permute.xlu0 0
    %476 = vperm.xlu0 %475, %v465
    %v477 = vpop.permute.xlu0 %476
    %480 = vset.pattern.permute.xlu0 0
    %481 = vperm.xlu0 %480, %v466
    %v482 = vpop.permute.xlu0 %481
    %485 = vset.pattern.permute.xlu0 0
    %486 = vperm.xlu0 %485, %v467
    %v487 = vpop.permute.xlu0 %486
    %490 = vset.pattern.permute.xlu0 0
    %491 = vperm.xlu0 %490, %v468
    %v492 = vpop.permute.xlu0 %491
    %v494 = vmul.f32 %v477, %v75
    %v495 = vmul.f32 %v482, %v75
    %v496 = vmul.f32 %v487, %v75
    %v497 = vmul.f32 %v492, %v75
    %499 = vset.pattern.permute.xlu0 0
    %500 = vperm.xlu0 %499, %v470
    %v501 = vpop.permute.xlu0 %500
    %504 = vset.pattern.permute.xlu0 0
    %505 = vperm.xlu0 %504, %v471
    %v506 = vpop.permute.xlu0 %505
    %509 = vset.pattern.permute.xlu0 0
    %510 = vperm.xlu0 %509, %v472
    %v511 = vpop.permute.xlu0 %510
    %514 = vset.pattern.permute.xlu0 0
    %515 = vperm.xlu0 %514, %v473
    %v516 = vpop.permute.xlu0 %515
    %v518 = vadd.f32 %v494, %v501
    %v519 = vadd.f32 %v495, %v506
    %v520 = vadd.f32 %v496, %v511
    %v521 = vadd.f32 %v497, %v516
    %v522 = vmax.f32 %v518, 0.0
    %v523 = vmax.f32 %v519, 0.0
    %v524 = vmax.f32 %v520, 0.0
    %v525 = vmax.f32 %v521, 0.0
    %v526 = vld [vmem:[%s3] sm:$0xf]
    %v527 = vld [vmem:[%s3 + $0x4] sm:$0xf]
    %v528 = vld [vmem:[%s3 + $0x8] sm:$0xf]
    %v529 = vld [vmem:[%s3 + $0xc] sm:$0xf]
    %v530 = vld [vmem:[%s4] sm:$0xff]
    %v531 = vld [vmem:[%s4 + $0x8] sm:$0xff]
    %v532 = vld [vmem:[%s4 + $0x10] sm:$0xff]
    %v533 = vld [vmem:[%s4 + $0x18] sm:$0xff]
    %v534 = vpack.c.bf16 %v523, %v522
    %v535 = vpack.c.bf16 %v525, %v524
    %537 = vset.pattern.permute.xlu0 0
    %538 = vperm.xlu0 %537, %v530
    %v539 = vpop.permute.xlu0 %538
    %542 = vset.pattern.permute.xlu0 0
    %543 = vperm.xlu0 %542, %v531
    %v544 = vpop.permute.xlu0 %543
    %547 = vset.pattern.permute.xlu0 0
    %548 = vperm.xlu0 %547, %v532
    %v549 = vpop.permute.xlu0 %548
    %552 = vset.pattern.permute.xlu0 0
    %553 = vperm.xlu0 %552, %v533
    %v554 = vpop.permute.xlu0 %553
    %v560 = vunpack.c.l.b16 %v526
    %v561 = vunpack.c.l.b16 %v527
    %v562 = vunpack.c.l.b16 %v528
    %v563 = vunpack.c.l.b16 %v529
    %v564 = vpack.c.b16 %v561, %v560
    %v565 = vpack.c.b16 %v563, %v562
    %v567 = vsel %vm149, %v564, 0
    %v570 = vsel %vm149, %v565, 0
    %572 = vmatprep.subr.bf16.mxu0 0
    %573 = vmatpush1.bf16.msra.mxu0 %v534
    %574 = vmatprep.subr.bf16.mxu0 0
    %575 = vmatpush1.bf16.msra.mxu0 %v535
    %576 = vmatprep.subr.bf16.mxu0 0
    %577 = vmatpush1.bf16.msra.mxu0 0
    %578 = vmatprep.subr.bf16.mxu0 0
    %579 = vmatpush1.bf16.msra.mxu0 0
    %580 = vmatprep.subr.bf16.mxu0 0
    %581 = vmatpush1.bf16.msra.mxu0 0
    %582 = vmatprep.subr.bf16.mxu0 0
    %583 = vmatpush1.bf16.msra.mxu0 0
    %584 = vmatprep.subr.bf16.mxu0 0
    %585 = vmatpush1.bf16.msra.mxu0 0
    %586 = vmatprep.subr.bf16.mxu0 0
    %587 = vmatpush1.bf16.msra.mxu0 0
    %588 = vmatprep.subr.bf16.mxu0 0
    %589 = vmatpush1.bf16.msra.mxu0 0
    %590 = vmatprep.subr.bf16.mxu0 0
    %591 = vmatpush1.bf16.msra.mxu0 0
    %592 = vmatprep.subr.bf16.mxu0 0
    %593 = vmatpush1.bf16.msra.mxu0 0
    %594 = vmatprep.subr.bf16.mxu0 0
    %595 = vmatpush1.bf16.msra.mxu0 0
    %596 = vmatprep.subr.bf16.mxu0 0
    %597 = vmatpush1.bf16.msra.mxu0 0
    %598 = vmatprep.subr.bf16.mxu0 0
    %599 = vmatpush1.bf16.msra.mxu0 0
    %600 = vmatprep.subr.bf16.mxu0 0
    %601 = vmatpush1.bf16.msra.mxu0 0
    %602 = vmatprep.subr.bf16.mxu0 0
    %603 = vmatpush1.bf16.msra.mxu0 0
    %604 = vmatprep.mubr.bf16.mxu0 0
    %605 = vmatmul.mubr.bf16.gmra.mrb[0].mxu0 %v567
    %v606 = vpop.f32.mrb[0].mxu0
    %v607 = vadd.f32 %v539, %v606
    %v608 = vpop.f32.mrb[0].mxu0
    %v609 = vpop.f32.mrb[0].mxu0
    %v610 = vadd.f32 %v544, %v609
    %v611 = vpop.f32.mrb[0].mxu0
    %612 = vmatprep.mubr.bf16.mxu0 0
    %613 = vmatmul.mubr.bf16.gmra.mrb[0].mxu0 %v570
    %v614 = vpop.f32.mrb[0].mxu0
    %v615 = vadd.f32 %v549, %v614
    %v616 = vpop.f32.mrb[0].mxu0
    %v617 = vpop.f32.mrb[0].mxu0
    %v618 = vadd.f32 %v554, %v617
    %v619 = vpop.f32.mrb[0].mxu0
    %620 = vdwg.mxu0
    %v621 = vmax.f32 %v607, 0.0
    %v622 = vmax.f32 %v610, 0.0
    %v623 = vmax.f32 %v615, 0.0
    %v624 = vmax.f32 %v618, 0.0
    %v625 = vld [vmem:[%s5] sm:$0xf]
    %v626 = vld [vmem:[%s5 + $0x4] sm:$0xf]
    %v627 = vld [vmem:[%s5 + $0x8] sm:$0xf]
    %v628 = vld [vmem:[%s5 + $0xc] sm:$0xf]
    %v629 = vld [vmem:[%s6] sm:$0xff]
    %v630 = vld [vmem:[%s6 + $0x8] sm:$0xff]
    %v631 = vld [vmem:[%s6 + $0x10] sm:$0xff]
    %v632 = vld [vmem:[%s6 + $0x18] sm:$0xff]
    %v633 = vpack.c.bf16 %v622, %v621
    %v634 = vpack.c.bf16 %v624, %v623
    %636 = vset.pattern.permute.xlu0 0
    %637 = vperm.xlu0 %636, %v629
    %v638 = vpop.permute.xlu0 %637
    %641 = vset.pattern.permute.xlu0 0
    %642 = vperm.xlu0 %641, %v630
    %v643 = vpop.permute.xlu0 %642
    %646 = vset.pattern.permute.xlu0 0
    %647 = vperm.xlu0 %646, %v631
    %v648 = vpop.permute.xlu0 %647
    %651 = vset.pattern.permute.xlu0 0
    %652 = vperm.xlu0 %651, %v632
    %v653 = vpop.permute.xlu0 %652
    %v659 = vunpack.c.l.b16 %v625
    %v660 = vunpack.c.l.b16 %v626
    %v661 = vunpack.c.l.b16 %v627
    %v662 = vunpack.c.l.b16 %v628
    %v663 = vpack.c.b16 %v660, %v659
    %v664 = vpack.c.b16 %v662, %v661
    %v666 = vsel %vm149, %v663, 0
    %v669 = vsel %vm149, %v664, 0
    %671 = vmatprep.subr.bf16.mxu0 0
    %672 = vmatpush1.bf16.msra.mxu0 %v633
    %673 = vmatprep.subr.bf16.mxu0 0
    %674 = vmatpush1.bf16.msra.mxu0 %v634
    %675 = vmatprep.subr.bf16.mxu0 0
    %676 = vmatpush1.bf16.msra.mxu0 0
    %677 = vmatprep.subr.bf16.mxu0 0
    %678 = vmatpush1.bf16.msra.mxu0 0
    %679 = vmatprep.subr.bf16.mxu0 0
    %680 = vmatpush1.bf16.msra.mxu0 0
    %681 = vmatprep.subr.bf16.mxu0 0
    %682 = vmatpush1.bf16.msra.mxu0 0
    %683 = vmatprep.subr.bf16.mxu0 0
    %684 = vmatpush1.bf16.msra.mxu0 0
    %685 = vmatprep.subr.bf16.mxu0 0
    %686 = vmatpush1.bf16.msra.mxu0 0
    %687 = vmatprep.subr.bf16.mxu0 0
    %688 = vmatpush1.bf16.msra.mxu0 0
    %689 = vmatprep.subr.bf16.mxu0 0
    %690 = vmatpush1.bf16.msra.mxu0 0
    %691 = vmatprep.subr.bf16.mxu0 0
    %692 = vmatpush1.bf16.msra.mxu0 0
    %693 = vmatprep.subr.bf16.mxu0 0
    %694 = vmatpush1.bf16.msra.mxu0 0
    %695 = vmatprep.subr.bf16.mxu0 0
    %696 = vmatpush1.bf16.msra.mxu0 0
    %697 = vmatprep.subr.bf16.mxu0 0
    %698 = vmatpush1.bf16.msra.mxu0 0
    %699 = vmatprep.subr.bf16.mxu0 0
    %700 = vmatpush1.bf16.msra.mxu0 0
    %701 = vmatprep.subr.bf16.mxu0 0
    %702 = vmatpush1.bf16.msra.mxu0 0
    %703 = vmatprep.mubr.bf16.mxu0 0
    %704 = vmatmul.mubr.bf16.gmra.mrb[0].mxu0 %v666
    %v705 = vpop.f32.mrb[0].mxu0
    %v706 = vadd.f32 %v638, %v705
    %v707 = vpop.f32.mrb[0].mxu0
    %v708 = vpop.f32.mrb[0].mxu0
    %v709 = vadd.f32 %v643, %v708
    %v710 = vpop.f32.mrb[0].mxu0
    %711 = vmatprep.mubr.bf16.mxu0 0
    %712 = vmatmul.mubr.bf16.gmra.mrb[0].mxu0 %v669
    %v713 = vpop.f32.mrb[0].mxu0
    %v714 = vadd.f32 %v648, %v713
    %v715 = vpop.f32.mrb[0].mxu0
    %v716 = vpop.f32.mrb[0].mxu0
    %v717 = vadd.f32 %v653, %v716
    %v718 = vpop.f32.mrb[0].mxu0
    %719 = vdwg.mxu0
    %v720 = vmax.f32 %v706, 0.0
    %v721 = vmax.f32 %v709, 0.0
    %v722 = vmax.f32 %v714, 0.0
    %v723 = vmax.f32 %v717, 0.0
    %v724 = vld [vmem:[%s7] sm:$0xf]
    %v725 = vld [vmem:[%s7 + $0x4] sm:$0xf]
    %v726 = vld [vmem:[%s7 + $0x8] sm:$0xf]
    %v727 = vld [vmem:[%s7 + $0xc] sm:$0xf]
    %v728 = vld [vmem:[%s8] sm:$0xff]
    %v729 = vld [vmem:[%s8 + $0x8] sm:$0xff]
    %v730 = vld [vmem:[%s8 + $0x10] sm:$0xff]
    %v731 = vld [vmem:[%s8 + $0x18] sm:$0xff]
    %v732 = vpack.c.bf16 %v721, %v720
    %v733 = vpack.c.bf16 %v723, %v722
    %735 = vset.pattern.permute.xlu0 0
    %736 = vperm.xlu0 %735, %v728
    %v737 = vpop.permute.xlu0 %736
    %740 = vset.pattern.permute.xlu0 0
    %741 = vperm.xlu0 %740, %v729
    %v742 = vpop.permute.xlu0 %741
    %745 = vset.pattern.permute.xlu0 0
    %746 = vperm.xlu0 %745, %v730
    %v747 = vpop.permute.xlu0 %746
    %750 = vset.pattern.permute.xlu0 0
    %751 = vperm.xlu0 %750, %v731
    %v752 = vpop.permute.xlu0 %751
    %v758 = vunpack.c.l.b16 %v724
    %v759 = vunpack.c.l.b16 %v725
    %v760 = vunpack.c.l.b16 %v726
    %v761 = vunpack.c.l.b16 %v727
    %v762 = vpack.c.b16 %v759, %v758
    %v763 = vpack.c.b16 %v761, %v760
    %v765 = vsel %vm149, %v762, 0
    %v768 = vsel %vm149, %v763, 0
    %770 = vmatprep.subr.bf16.mxu0 0
    %771 = vmatpush1.bf16.msra.mxu0 %v732
    %772 = vmatprep.subr.bf16.mxu0 0
    %773 = vmatpush1.bf16.msra.mxu0 %v733
    %774 = vmatprep.subr.bf16.mxu0 0
    %775 = vmatpush1.bf16.msra.mxu0 0
    %776 = vmatprep.subr.bf16.mxu0 0
    %777 = vmatpush1.bf16.msra.mxu0 0
    %778 = vmatprep.subr.bf16.mxu0 0
    %779 = vmatpush1.bf16.msra.mxu0 0
    %780 = vmatprep.subr.bf16.mxu0 0
    %781 = vmatpush1.bf16.msra.mxu0 0
    %782 = vmatprep.subr.bf16.mxu0 0
    %783 = vmatpush1.bf16.msra.mxu0 0
    %784 = vmatprep.subr.bf16.mxu0 0
    %785 = vmatpush1.bf16.msra.mxu0 0
    %786 = vmatprep.subr.bf16.mxu0 0
    %787 = vmatpush1.bf16.msra.mxu0 0
    %788 = vmatprep.subr.bf16.mxu0 0
    %789 = vmatpush1.bf16.msra.mxu0 0
    %790 = vmatprep.subr.bf16.mxu0 0
    %791 = vmatpush1.bf16.msra.mxu0 0
    %792 = vmatprep.subr.bf16.mxu0 0
    %793 = vmatpush1.bf16.msra.mxu0 0
    %794 = vmatprep.subr.bf16.mxu0 0
    %795 = vmatpush1.bf16.msra.mxu0 0
    %796 = vmatprep.subr.bf16.mxu0 0
    %797 = vmatpush1.bf16.msra.mxu0 0
    %798 = vmatprep.subr.bf16.mxu0 0
    %799 = vmatpush1.bf16.msra.mxu0 0
    %800 = vmatprep.subr.bf16.mxu0 0
    %801 = vmatpush1.bf16.msra.mxu0 0
    %802 = vmatprep.mubr.bf16.mxu0 0
    %803 = vmatmul.mubr.bf16.gmra.mrb[0].mxu0 %v765
    %v804 = vpop.f32.mrb[0].mxu0
    %v805 = vadd.f32 %v737, %v804
    %v806 = vpop.f32.mrb[0].mxu0
    %v807 = vpop.f32.mrb[0].mxu0
    %v808 = vadd.f32 %v742, %v807
    %v809 = vpop.f32.mrb[0].mxu0
    %810 = vmatprep.mubr.bf16.mxu0 0
    %811 = vmatmul.mubr.bf16.gmra.mrb[0].mxu0 %v768
    %v812 = vpop.f32.mrb[0].mxu0
    %v813 = vadd.f32 %v747, %v812
    %v814 = vpop.f32.mrb[0].mxu0
    %v815 = vpop.f32.mrb[0].mxu0
    %v816 = vadd.f32 %v752, %v815
    %v817 = vpop.f32.mrb[0].mxu0
    %818 = vdwg.mxu0
    %v819 = vmax.f32 %v805, 0.0
    %v820 = vmax.f32 %v808, 0.0
    %v821 = vmax.f32 %v813, 0.0
    %v822 = vmax.f32 %v816, 0.0
    %v823 = vld [vmem:[%s9] sm:$0x1]
    %v824 = vld [vmem:[#allocation2] sm:$0x1]
    %v825 = vpack.c.bf16 %v820, %v819
    %v826 = vpack.c.bf16 %v822, %v821
    %828 = vset.pattern.permute.xlu0 0
    %829 = vperm.xlu0 %828, %v824
    %v830 = vpop.permute.xlu0 %829
    %v832 = vlaneseq
    %v833 = vshrl.u32 %v832, 7
    %v834 = vsub.s32 0, %v833
    %v835 = vrot.slane %v830, %v834
    %v837 = vsel %vm149, %v823, 0
    %839 = vmatprep.subr.bf16.mxu0 0
    %840 = vmatpush1.bf16.msra.mxu0 %v825
    %841 = vmatprep.subr.bf16.mxu0 0
    %842 = vmatpush1.bf16.msra.mxu0 %v826
    %843 = vmatprep.subr.bf16.mxu0 0
    %844 = vmatpush1.bf16.msra.mxu0 0
    %845 = vmatprep.subr.bf16.mxu0 0
    %846 = vmatpush1.bf16.msra.mxu0 0
    %847 = vmatprep.subr.bf16.mxu0 0
    %848 = vmatpush1.bf16.msra.mxu0 0
    %849 = vmatprep.subr.bf16.mxu0 0
    %850 = vmatpush1.bf16.msra.mxu0 0
    %851 = vmatprep.subr.bf16.mxu0 0
    %852 = vmatpush1.bf16.msra.mxu0 0
    %853 = vmatprep.subr.bf16.mxu0 0
    %854 = vmatpush1.bf16.msra.mxu0 0
    %855 = vmatprep.subr.bf16.mxu0 0
    %856 = vmatpush1.bf16.msra.mxu0 0
    %857 = vmatprep.subr.bf16.mxu0 0
    %858 = vmatpush1.bf16.msra.mxu0 0
    %859 = vmatprep.subr.bf16.mxu0 0
    %860 = vmatpush1.bf16.msra.mxu0 0
    %861 = vmatprep.subr.bf16.mxu0 0
    %862 = vmatpush1.bf16.msra.mxu0 0
    %863 = vmatprep.subr.bf16.mxu0 0
    %864 = vmatpush1.bf16.msra.mxu0 0
    %865 = vmatprep.subr.bf16.mxu0 0
    %866 = vmatpush1.bf16.msra.mxu0 0
    %867 = vmatprep.subr.bf16.mxu0 0
    %868 = vmatpush1.bf16.msra.mxu0 0
    %869 = vmatprep.subr.bf16.mxu0 0
    %870 = vmatpush1.bf16.msra.mxu0 0
    %871 = vmatprep.mubr.bf16.mxu0 0
    %872 = vmatmul.mubr.bf16.gmra.mrb[0].mxu0 %v837
    %v873 = vpop.f32.mrb[0].mxu0
    %v874 = vadd.f32 %v835, %v873
    %v875 = vpop.f32.mrb[0].mxu0
    %v876 = vpop.f32.mrb[0].mxu0
    %v877 = vpop.f32.mrb[0].mxu0
    %878 = vdwg.mxu0
    %s879 = scalar_lea.vmem [#allocation3], 1
    %880 = vst [vmem:[%s879] sm:$0x1] %v874
    // Predicated region
    $region46: #{tpu_custom_call.1} parent=1 // pred_check
      _
    $region47: #{tpu_custom_call.1} parent=1 // pred_check_branch
      %882 = sbr.rel (0) target = $region49
    $region48: #{tpu_custom_call.1} parent=1 // pred_region
      %s884 = ssub.s32 32, 32
      %885 = vsyncadd [#allocation4], %s884
      %s886 = sshll.u32 [#allocation3], 4
      %s887 = int_to_ptr.vmem [resolvable:$true] %s886
      %892 = dma.vmem_to_hbm [thread:$0]  %s887, 32, %s11, [#allocation4], 16, 16, 1
    $region49: #{tpu_custom_call.1} parent=1 // pred_fallthru
      _
    // Predicated region
    $region50: #{tpu_custom_call.1} parent=1 // pred_check
      _
    $region51: #{tpu_custom_call.1} parent=1 // pred_check_branch
      %894 = sbr.rel (0) target = $region53
    $region52: #{tpu_custom_call.1} parent=1 // pred_region
      %895 = dma.done [#allocation4], 32
    $region53: #{tpu_custom_call.1} parent=1 // pred_fallthru
      _
    %896 = vsyncpa [#allocation4], 1

</llo_original>
